<compile_context>
chip_gen: v6e
topology: v6e:2x2x1
jax: 0.10.0
libtpu: 0.0.40
codegen_flags: <defaults>
</compile_context>

<pallas_src>
import math

import jax
import jax.numpy as jnp
import numpy as np
from jax import lax
from jax.experimental import pallas as pl
from jax.experimental.pallas import tpu as pltpu

# ---- config (small, deterministic) ----
B, T, C = 2, 8, 32
NH = 4
HD = C // NH
BT = B * T
EPS = 1e-5
GELU_K = math.sqrt(2.0 / math.pi)
NEG_INF = -1e30
SCALE = 1.0 / math.sqrt(HD)
LANES = 128
N_PARAM_ROWS = 8            # rows in the packed slab before the mask-bias rows


def _layernorm(x, w, b):
    mu = jnp.mean(x, axis=-1, keepdims=True)
    var = jnp.mean((x - mu) ** 2, axis=-1, keepdims=True)
    return (x - mu) * lax.rsqrt(var + EPS) * w + b


def _new_gelu(x):
    return 0.5 * x * (1.0 + jnp.tanh(GELU_K * (x + 0.044715 * x * x * x)))


def block_kernel(x_ref, slab_ref, wqkv_ref, wproj_ref, wfc_ref, wfp_ref, o_ref):
    bf16 = jnp.bfloat16
    x = x_ref[...]                                    # (BT, C) f32, rows are (b, t)

    # Packed small operands: one lane-dense (8+BT, 128) slab, slices all start at lane 0.
    ln1w = slab_ref[0:1, 0:C]
    ln1b = slab_ref[1:2, 0:C]
    ln2w = slab_ref[2:3, 0:C]
    ln2b = slab_ref[3:4, 0:C]
    bproj = slab_ref[4:5, 0:C]
    bfp = slab_ref[5:6, 0:C]
    bqkv = slab_ref[6:7, 0:3 * C]
    bfc = slab_ref[7:8, 0:4 * C]
    mask_bias = slab_ref[N_PARAM_ROWS:N_PARAM_ROWS + BT, 0:BT]   # (BT, BT) of {0, -1e30}

    # ---------- attention branch ----------
    h = _layernorm(x, ln1w, ln1b)                                       # f32 (BT, C)

    # Fused qkv projection: single lane-dense matmul (BT, C) @ (C, 3C).
    qkv = jnp.dot(h.astype(bf16), wqkv_ref[...],
                  preferred_element_type=jnp.float32) + bqkv            # f32 (BT, 3C)
    q = qkv[:, 0 * C:1 * C] * SCALE       # fold softmax scale on (BT, C), not (NH, BT, BT)
    k = qkv[:, 1 * C:2 * C]
    v = qkv[:, 2 * C:3 * C]

    # Per-head (NH, BT, HD) views: lane slices + leading-axis stack (no minor-dim reshape).
    q3 = jnp.stack([q[:, hh * HD:(hh + 1) * HD] for hh in range(NH)], axis=0).astype(bf16)
    k3 = jnp.stack([k[:, hh * HD:(hh + 1) * HD] for hh in range(NH)], axis=0).astype(bf16)
    v3 = jnp.stack([v[:, hh * HD:(hh + 1) * HD] for hh in range(NH)], axis=0).astype(bf16)

    # Batched scores (NH, BT, BT) + constant block-diagonal/causal additive mask.
    s = jnp.einsum("hrd,hsd->hrs", q3, k3, preferred_element_type=jnp.float32)
    s = s + mask_bias
    s = s - jnp.max(s, axis=-1, keepdims=True)
    p = jnp.exp(s)
    p = p * pl.reciprocal(jnp.sum(p, axis=-1, keepdims=True), approx=True)

    # PV per head, then re-join heads into one (BT, C) slab and do ONE output
    # projection with full C=32 contraction against the original (C, C) Wproj.
    y3 = jnp.einsum("hrs,hsd->hrd", p.astype(bf16), v3,
                    preferred_element_type=jnp.float32)                 # (NH, BT, HD)
    y = jnp.concatenate([y3[hh] for hh in range(NH)], axis=-1)          # (BT, C)
    att = jnp.dot(y.astype(bf16), wproj_ref[...],
                  preferred_element_type=jnp.float32) + bproj
    x1 = x + att

    # ---------- MLP branch ----------
    h2 = _layernorm(x1, ln2w, ln2b)
    f = jnp.dot(h2.astype(bf16), wfc_ref[...],
                preferred_element_type=jnp.float32) + bfc               # (BT, 4C)
    g = _new_gelu(f)
    m = jnp.dot(g.astype(bf16), wfp_ref[...],
                preferred_element_type=jnp.float32) + bfp               # (BT, C)

    o_ref[...] = x1 + m


# Compile-time constant: block-diagonal (same batch) + causal additive mask bias.
_ROW = np.arange(BT)[:, None]
_COL = np.arange(BT)[None, :]
_MASK_BIAS_NP = np.where(((_ROW // T) == (_COL // T)) & (_COL <= _ROW),
                         0.0, NEG_INF).astype(np.float32)


def _pad_lanes(row, width=LANES):
    row = jnp.asarray(row, jnp.float32).reshape(1, -1)
    return jnp.pad(row, ((0, 0), (0, width - row.shape[1])))


def block_forward(x, p):
    """x: (B, T, C) float32; params in x @ W form. Layout plumbing stays in the wrapper."""
    bf16 = jnp.bfloat16
    x2 = x.reshape(BT, C)

    # One packed slab: LN params, all biases, and the constant mask bias.
    slab = jnp.concatenate(
        [_pad_lanes(p["ln1w"]), _pad_lanes(p["ln1b"]),
         _pad_lanes(p["ln2w"]), _pad_lanes(p["ln2b"]),
         _pad_lanes(p["bproj"]), _pad_lanes(p["bfp"]),
         _pad_lanes(p["battn"]), _pad_lanes(p["bfc"]),
         jnp.asarray(np.pad(_MASK_BIAS_NP, ((0, 0), (0, LANES - BT))))],
        axis=0)                                                          # (8+BT, 128) f32

    wqkv = p["wattn"].astype(bf16)       # (C, 3C)
    wproj = p["wproj"].astype(bf16)      # (C, C)
    wfc = p["wfc"].astype(bf16)          # (C, 4C)
    wfp = p["wfp"].astype(bf16)          # (4C, C)

    vmem = lambda: pl.BlockSpec(memory_space=pltpu.MemorySpace.VMEM)
    out = pl.pallas_call(
        block_kernel,
        out_shape=jax.ShapeDtypeStruct((BT, C), jnp.float32),
        in_specs=[vmem() for _ in range(6)],
        out_specs=vmem(),
    )(x2, slab, wqkv, wproj, wfc, wfp)
    return out.reshape(B, T, C)


def block_reference(x, p):
    """Pure-JAX f32 reference mirroring the PyTorch forward (dropout=0)."""
    def ln(z, w, b):
        mu = z.mean(-1, keepdims=True)
        var = ((z - mu) ** 2).mean(-1, keepdims=True)
        return (z - mu) / jnp.sqrt(var + EPS) * w + b

    h = ln(x, p["ln1w"], p["ln1b"])
    qkv = h @ p["wattn"] + p["battn"]
    q, k, v = jnp.split(qkv, 3, axis=-1)
    q = q.reshape(B, T, NH, HD).transpose(0, 2, 1, 3)
    k = k.reshape(B, T, NH, HD).transpose(0, 2, 1, 3)
    v = v.reshape(B, T, NH, HD).transpose(0, 2, 1, 3)
    att = jnp.einsum("bhtd,bhsd->bhts", q, k) / math.sqrt(HD)
    mask = jnp.tril(jnp.ones((T, T), dtype=bool))
    att = jnp.where(mask, att, -jnp.inf)
    att = jax.nn.softmax(att, axis=-1)
    y = jnp.einsum("bhts,bhsd->bhtd", att, v)
    y = y.transpose(0, 2, 1, 3).reshape(B, T, C)
    y = y @ p["wproj"] + p["bproj"]
    x = x + y
    h2 = ln(x, p["ln2w"], p["ln2b"])
    f = h2 @ p["wfc"] + p["bfc"]
    f = 0.5 * f * (1.0 + jnp.tanh(GELU_K * (f + 0.044715 * f ** 3)))
    m = f @ p["wfp"] + p["bfp"]
    return x + m


def init_params(key):
    ks = jax.random.split(key, 8)
    s = 0.02
    # nn.Linear weight is (out, in); we store transposed so the math is x @ W.
    return {
        "ln1w": jnp.ones((1, C), jnp.float32),
        "ln1b": jnp.zeros((1, C), jnp.float32),
        "wattn": s * jax.random.normal(ks[0], (C, 3 * C), jnp.float32),
        "battn": s * jax.random.normal(ks[1], (1, 3 * C), jnp.float32),
        "wproj": s * jax.random.normal(ks[2], (C, C), jnp.float32),
        "bproj": s * jax.random.normal(ks[3], (1, C), jnp.float32),
        "ln2w": jnp.ones((1, C), jnp.float32),
        "ln2b": jnp.zeros((1, C), jnp.float32),
        "wfc": s * jax.random.normal(ks[4], (C, 4 * C), jnp.float32),
        "bfc": s * jax.random.normal(ks[5], (1, 4 * C), jnp.float32),
        "wfp": s * jax.random.normal(ks[6], (4 * C, C), jnp.float32),
        "bfp": s * jax.random.normal(ks[7], (1, C), jnp.float32),
    }


if __name__ == "__main__":
    key = jax.random.PRNGKey(0)
    kx, kp = jax.random.split(key)
    x = jax.random.normal(kx, (B, T, C), jnp.float32)
    params = init_params(kp)

    out = block_forward(x, params)
    out = jax.block_until_ready(out)

    ref = block_reference(x, params)
    # Tolerance accounts for bf16 MXU inputs (f32 accumulation) + approx reciprocal.
    np.testing.assert_allclose(np.asarray(out), np.asarray(ref), rtol=2e-2, atol=5e-3)

    print("KERNEL_OK")
</pallas_src>

<mosaic_0001>
module attributes {stable_mosaic.version = 11 : i64} {
  func.func @block_kernel(%arg0: memref<16x32xf32, #tpu.memory_space<vmem>>, %arg1: memref<24x128xf32, #tpu.memory_space<vmem>>, %arg2: memref<32x96xbf16, #tpu.memory_space<vmem>>, %arg3: memref<32x32xbf16, #tpu.memory_space<vmem>>, %arg4: memref<32x128xbf16, #tpu.memory_space<vmem>>, %arg5: memref<128x32xbf16, #tpu.memory_space<vmem>>, %arg6: memref<16x32xf32, #tpu.memory_space<vmem>>) attributes {dimension_semantics = [], scalar_prefetch = 0 : i64, scratch_operands = 0 : i64, tpu.core_type = #tpu.core_type<tc>} {
    %c0 = arith.constant 0 : index
    %c0_0 = arith.constant 0 : index
    %0 = vector.load %arg0[%c0, %c0_0] : memref<16x32xf32, #tpu.memory_space<vmem>>, vector<16x32xf32>
    %c0_1 = arith.constant 0 : index
    %c0_2 = arith.constant 0 : index
    %1 = vector.load %arg1[%c0_1, %c0_2] : memref<24x128xf32, #tpu.memory_space<vmem>>, vector<1x32xf32>
    %c1 = arith.constant 1 : index
    %c0_3 = arith.constant 0 : index
    %2 = vector.load %arg1[%c1, %c0_3] : memref<24x128xf32, #tpu.memory_space<vmem>>, vector<1x32xf32>
    %c2 = arith.constant 2 : index
    %c0_4 = arith.constant 0 : index
    %3 = vector.load %arg1[%c2, %c0_4] : memref<24x128xf32, #tpu.memory_space<vmem>>, vector<1x32xf32>
    %c3 = arith.constant 3 : index
    %c0_5 = arith.constant 0 : index
    %4 = vector.load %arg1[%c3, %c0_5] : memref<24x128xf32, #tpu.memory_space<vmem>>, vector<1x32xf32>
    %c4 = arith.constant 4 : index
    %c0_6 = arith.constant 0 : index
    %5 = vector.load %arg1[%c4, %c0_6] : memref<24x128xf32, #tpu.memory_space<vmem>>, vector<1x32xf32>
    %c5 = arith.constant 5 : index
    %c0_7 = arith.constant 0 : index
    %6 = vector.load %arg1[%c5, %c0_7] : memref<24x128xf32, #tpu.memory_space<vmem>>, vector<1x32xf32>
    %c6 = arith.constant 6 : index
    %c0_8 = arith.constant 0 : index
    %7 = vector.load %arg1[%c6, %c0_8] : memref<24x128xf32, #tpu.memory_space<vmem>>, vector<1x96xf32>
    %c7 = arith.constant 7 : index
    %c0_9 = arith.constant 0 : index
    %8 = vector.load %arg1[%c7, %c0_9] : memref<24x128xf32, #tpu.memory_space<vmem>>, vector<1x128xf32>
    %c8 = arith.constant 8 : index
    %c0_10 = arith.constant 0 : index
    %9 = vector.load %arg1[%c8, %c0_10] : memref<24x128xf32, #tpu.memory_space<vmem>>, vector<16x16xf32>
    %cst = arith.constant dense<0.000000e+00> : vector<16xf32>
    %10 = vector.multi_reduction <add>, %0, %cst [1] : vector<16x32xf32> to vector<16xf32>
    %11 = vector.shape_cast %10 : vector<16xf32> to vector<16x1xf32>
    %cst_11 = arith.constant 3.200000e+01 : f32
    %12 = vector.broadcast %cst_11 : f32 to vector<16x1xf32>
    %13 = arith.divf %11, %12 : vector<16x1xf32>
    %14 = vector.broadcast %13 : vector<16x1xf32> to vector<16x32xf32>
    %15 = arith.subf %0, %14 : vector<16x32xf32>
    %16 = arith.mulf %15, %15 : vector<16x32xf32>
    %cst_12 = arith.constant dense<0.000000e+00> : vector<16xf32>
    %17 = vector.multi_reduction <add>, %16, %cst_12 [1] : vector<16x32xf32> to vector<16xf32>
    %18 = vector.shape_cast %17 : vector<16xf32> to vector<16x1xf32>
    %cst_13 = arith.constant 3.200000e+01 : f32
    %19 = vector.broadcast %cst_13 : f32 to vector<16x1xf32>
    %20 = arith.divf %18, %19 : vector<16x1xf32>
    %21 = vector.broadcast %13 : vector<16x1xf32> to vector<16x32xf32>
    %22 = arith.subf %0, %21 : vector<16x32xf32>
    %cst_14 = arith.constant 9.99999974E-6 : f32
    %23 = vector.broadcast %cst_14 : f32 to vector<16x1xf32>
    %24 = arith.addf %20, %23 : vector<16x1xf32>
    %25 = math.rsqrt %24 : vector<16x1xf32>
    %26 = vector.broadcast %25 : vector<16x1xf32> to vector<16x32xf32>
    %27 = arith.mulf %22, %26 : vector<16x32xf32>
    %28 = vector.broadcast %1 : vector<1x32xf32> to vector<16x32xf32>
    %29 = arith.mulf %27, %28 : vector<16x32xf32>
    %30 = vector.broadcast %2 : vector<1x32xf32> to vector<16x32xf32>
    %31 = arith.addf %29, %30 : vector<16x32xf32>
    %32 = arith.truncf %31 : vector<16x32xf32> to vector<16x32xbf16>
    %c0_15 = arith.constant 0 : index
    %c0_16 = arith.constant 0 : index
    %33 = vector.load %arg2[%c0_15, %c0_16] : memref<32x96xbf16, #tpu.memory_space<vmem>>, vector<32x96xbf16>
    %cst_17 = arith.constant dense<0.000000e+00> : vector<16x96xf32>
    %34 = tpu.matmul %32, %33, %cst_17 {dimension_numbers = #tpu.dot_dimension_numbers<[1], [0], [0], [1], [0, 0, 1, 1], [], []>} : vector<16x32xbf16>, vector<32x96xbf16>, vector<16x96xf32> -> vector<16x96xf32>
    %35 = vector.broadcast %7 : vector<1x96xf32> to vector<16x96xf32>
    %36 = arith.addf %34, %35 : vector<16x96xf32>
    %37 = vector.extract_strided_slice %36 {offsets = [0, 0], sizes = [16, 32], strides = [1, 1]} : vector<16x96xf32> to vector<16x32xf32>
    %cst_18 = arith.constant 0.353553385 : f32
    %38 = vector.broadcast %cst_18 : f32 to vector<16x32xf32>
    %39 = arith.mulf %37, %38 : vector<16x32xf32>
    %40 = vector.extract_strided_slice %36 {offsets = [0, 32], sizes = [16, 32], strides = [1, 1]} : vector<16x96xf32> to vector<16x32xf32>
    %41 = vector.extract_strided_slice %36 {offsets = [0, 64], sizes = [16, 32], strides = [1, 1]} : vector<16x96xf32> to vector<16x32xf32>
    %42 = vector.extract_strided_slice %39 {offsets = [0, 0], sizes = [16, 8], strides = [1, 1]} : vector<16x32xf32> to vector<16x8xf32>
    %43 = vector.extract_strided_slice %39 {offsets = [0, 8], sizes = [16, 8], strides = [1, 1]} : vector<16x32xf32> to vector<16x8xf32>
    %44 = vector.extract_strided_slice %39 {offsets = [0, 16], sizes = [16, 8], strides = [1, 1]} : vector<16x32xf32> to vector<16x8xf32>
    %45 = vector.extract_strided_slice %39 {offsets = [0, 24], sizes = [16, 8], strides = [1, 1]} : vector<16x32xf32> to vector<16x8xf32>
    %46 = vector.shape_cast %42 : vector<16x8xf32> to vector<1x16x8xf32>
    %47 = vector.shape_cast %43 : vector<16x8xf32> to vector<1x16x8xf32>
    %48 = vector.shape_cast %44 : vector<16x8xf32> to vector<1x16x8xf32>
    %49 = vector.shape_cast %45 : vector<16x8xf32> to vector<1x16x8xf32>
    %50 = tpu.concatenate %46, %47, %48, %49 in 0 : vector<1x16x8xf32>, vector<1x16x8xf32>, vector<1x16x8xf32>, vector<1x16x8xf32> -> vector<4x16x8xf32>
    %51 = arith.truncf %50 : vector<4x16x8xf32> to vector<4x16x8xbf16>
    %52 = vector.extract_strided_slice %40 {offsets = [0, 0], sizes = [16, 8], strides = [1, 1]} : vector<16x32xf32> to vector<16x8xf32>
    %53 = vector.extract_strided_slice %40 {offsets = [0, 8], sizes = [16, 8], strides = [1, 1]} : vector<16x32xf32> to vector<16x8xf32>
    %54 = vector.extract_strided_slice %40 {offsets = [0, 16], sizes = [16, 8], strides = [1, 1]} : vector<16x32xf32> to vector<16x8xf32>
    %55 = vector.extract_strided_slice %40 {offsets = [0, 24], sizes = [16, 8], strides = [1, 1]} : vector<16x32xf32> to vector<16x8xf32>
    %56 = vector.shape_cast %52 : vector<16x8xf32> to vector<1x16x8xf32>
    %57 = vector.shape_cast %53 : vector<16x8xf32> to vector<1x16x8xf32>
    %58 = vector.shape_cast %54 : vector<16x8xf32> to vector<1x16x8xf32>
    %59 = vector.shape_cast %55 : vector<16x8xf32> to vector<1x16x8xf32>
    %60 = tpu.concatenate %56, %57, %58, %59 in 0 : vector<1x16x8xf32>, vector<1x16x8xf32>, vector<1x16x8xf32>, vector<1x16x8xf32> -> vector<4x16x8xf32>
    %61 = arith.truncf %60 : vector<4x16x8xf32> to vector<4x16x8xbf16>
    %62 = vector.extract_strided_slice %41 {offsets = [0, 0], sizes = [16, 8], strides = [1, 1]} : vector<16x32xf32> to vector<16x8xf32>
    %63 = vector.extract_strided_slice %41 {offsets = [0, 8], sizes = [16, 8], strides = [1, 1]} : vector<16x32xf32> to vector<16x8xf32>
    %64 = vector.extract_strided_slice %41 {offsets = [0, 16], sizes = [16, 8], strides = [1, 1]} : vector<16x32xf32> to vector<16x8xf32>
    %65 = vector.extract_strided_slice %41 {offsets = [0, 24], sizes = [16, 8], strides = [1, 1]} : vector<16x32xf32> to vector<16x8xf32>
    %66 = vector.shape_cast %62 : vector<16x8xf32> to vector<1x16x8xf32>
    %67 = vector.shape_cast %63 : vector<16x8xf32> to vector<1x16x8xf32>
    %68 = vector.shape_cast %64 : vector<16x8xf32> to vector<1x16x8xf32>
    %69 = vector.shape_cast %65 : vector<16x8xf32> to vector<1x16x8xf32>
    %70 = tpu.concatenate %66, %67, %68, %69 in 0 : vector<1x16x8xf32>, vector<1x16x8xf32>, vector<1x16x8xf32>, vector<1x16x8xf32> -> vector<4x16x8xf32>
    %71 = arith.truncf %70 : vector<4x16x8xf32> to vector<4x16x8xbf16>
    "tpu.trace_start"() <{level = 10 : i32, message = "hrd,hsd->hrs"}> : () -> ()
    %cst_19 = arith.constant dense<0.000000e+00> : vector<4x16x16xf32>
    %72 = tpu.matmul %51, %61, %cst_19 {dimension_numbers = #tpu.dot_dimension_numbers<[2], [2], [1], [1], [0, 0, 0, 1, 1, 1], [0], [0]>} : vector<4x16x8xbf16>, vector<4x16x8xbf16>, vector<4x16x16xf32> -> vector<4x16x16xf32>
    "tpu.trace_stop"() : () -> ()
    %73 = vector.shape_cast %9 : vector<16x16xf32> to vector<1x16x16xf32>
    %74 = vector.broadcast %73 : vector<1x16x16xf32> to vector<4x16x16xf32>
    %75 = arith.addf %72, %74 : vector<4x16x16xf32>
    %cst_20 = arith.constant dense<0xFF800000> : vector<4x16xf32>
    %76 = vector.multi_reduction <maximumf>, %75, %cst_20 [2] : vector<4x16x16xf32> to vector<4x16xf32>
    %77 = vector.shape_cast %76 : vector<4x16xf32> to vector<4x16x1xf32>
    %78 = vector.broadcast %77 : vector<4x16x1xf32> to vector<4x16x16xf32>
    %79 = arith.subf %75, %78 : vector<4x16x16xf32>
    %80 = math.exp %79 : vector<4x16x16xf32>
    %cst_21 = arith.constant dense<0.000000e+00> : vector<4x16xf32>
    %81 = vector.multi_reduction <add>, %80, %cst_21 [2] : vector<4x16x16xf32> to vector<4x16xf32>
    %82 = vector.shape_cast %81 : vector<4x16xf32> to vector<4x16x1xf32>
    %83 = tpu.reciprocal %82 {approx = true} : vector<4x16x1xf32> -> vector<4x16x1xf32>
    %84 = vector.broadcast %83 : vector<4x16x1xf32> to vector<4x16x16xf32>
    %85 = arith.mulf %80, %84 : vector<4x16x16xf32>
    %86 = arith.truncf %85 : vector<4x16x16xf32> to vector<4x16x16xbf16>
    "tpu.trace_start"() <{level = 10 : i32, message = "hrs,hsd->hrd"}> : () -> ()
    %cst_22 = arith.constant dense<0.000000e+00> : vector<4x16x8xf32>
    %87 = tpu.matmul %86, %71, %cst_22 {dimension_numbers = #tpu.dot_dimension_numbers<[2], [1], [1], [2], [0, 0, 0, 1, 1, 2], [0], [0]>} : vector<4x16x16xbf16>, vector<4x16x8xbf16>, vector<4x16x8xf32> -> vector<4x16x8xf32>
    "tpu.trace_stop"() : () -> ()
    %88 = vector.extract_strided_slice %87 {offsets = [0, 0, 0], sizes = [1, 16, 8], strides = [1, 1, 1]} : vector<4x16x8xf32> to vector<1x16x8xf32>
    %89 = vector.shape_cast %88 : vector<1x16x8xf32> to vector<16x8xf32>
    %90 = vector.extract_strided_slice %87 {offsets = [1, 0, 0], sizes = [1, 16, 8], strides = [1, 1, 1]} : vector<4x16x8xf32> to vector<1x16x8xf32>
    %91 = vector.shape_cast %90 : vector<1x16x8xf32> to vector<16x8xf32>
    %92 = vector.extract_strided_slice %87 {offsets = [2, 0, 0], sizes = [1, 16, 8], strides = [1, 1, 1]} : vector<4x16x8xf32> to vector<1x16x8xf32>
    %93 = vector.shape_cast %92 : vector<1x16x8xf32> to vector<16x8xf32>
    %94 = vector.extract_strided_slice %87 {offsets = [3, 0, 0], sizes = [1, 16, 8], strides = [1, 1, 1]} : vector<4x16x8xf32> to vector<1x16x8xf32>
    %95 = vector.shape_cast %94 : vector<1x16x8xf32> to vector<16x8xf32>
    %96 = tpu.concatenate %89, %91, %93, %95 in 1 : vector<16x8xf32>, vector<16x8xf32>, vector<16x8xf32>, vector<16x8xf32> -> vector<16x32xf32>
    %97 = arith.truncf %96 : vector<16x32xf32> to vector<16x32xbf16>
    %c0_23 = arith.constant 0 : index
    %c0_24 = arith.constant 0 : index
    %98 = vector.load %arg3[%c0_23, %c0_24] : memref<32x32xbf16, #tpu.memory_space<vmem>>, vector<32x32xbf16>
    %cst_25 = arith.constant dense<0.000000e+00> : vector<16x32xf32>
    %99 = tpu.matmul %97, %98, %cst_25 {dimension_numbers = #tpu.dot_dimension_numbers<[1], [0], [0], [1], [0, 0, 1, 1], [], []>} : vector<16x32xbf16>, vector<32x32xbf16>, vector<16x32xf32> -> vector<16x32xf32>
    %100 = vector.broadcast %5 : vector<1x32xf32> to vector<16x32xf32>
    %101 = arith.addf %99, %100 : vector<16x32xf32>
    %102 = arith.addf %0, %101 : vector<16x32xf32>
    %cst_26 = arith.constant dense<0.000000e+00> : vector<16xf32>
    %103 = vector.multi_reduction <add>, %102, %cst_26 [1] : vector<16x32xf32> to vector<16xf32>
    %104 = vector.shape_cast %103 : vector<16xf32> to vector<16x1xf32>
    %cst_27 = arith.constant 3.200000e+01 : f32
    %105 = vector.broadcast %cst_27 : f32 to vector<16x1xf32>
    %106 = arith.divf %104, %105 : vector<16x1xf32>
    %107 = vector.broadcast %106 : vector<16x1xf32> to vector<16x32xf32>
    %108 = arith.subf %102, %107 : vector<16x32xf32>
    %109 = arith.mulf %108, %108 : vector<16x32xf32>
    %cst_28 = arith.constant dense<0.000000e+00> : vector<16xf32>
    %110 = vector.multi_reduction <add>, %109, %cst_28 [1] : vector<16x32xf32> to vector<16xf32>
    %111 = vector.shape_cast %110 : vector<16xf32> to vector<16x1xf32>
    %cst_29 = arith.constant 3.200000e+01 : f32
    %112 = vector.broadcast %cst_29 : f32 to vector<16x1xf32>
    %113 = arith.divf %111, %112 : vector<16x1xf32>
    %114 = vector.broadcast %106 : vector<16x1xf32> to vector<16x32xf32>
    %115 = arith.subf %102, %114 : vector<16x32xf32>
    %cst_30 = arith.constant 9.99999974E-6 : f32
    %116 = vector.broadcast %cst_30 : f32 to vector<16x1xf32>
    %117 = arith.addf %113, %116 : vector<16x1xf32>
    %118 = math.rsqrt %117 : vector<16x1xf32>
    %119 = vector.broadcast %118 : vector<16x1xf32> to vector<16x32xf32>
    %120 = arith.mulf %115, %119 : vector<16x32xf32>
    %121 = vector.broadcast %3 : vector<1x32xf32> to vector<16x32xf32>
    %122 = arith.mulf %120, %121 : vector<16x32xf32>
    %123 = vector.broadcast %4 : vector<1x32xf32> to vector<16x32xf32>
    %124 = arith.addf %122, %123 : vector<16x32xf32>
    %125 = arith.truncf %124 : vector<16x32xf32> to vector<16x32xbf16>
    %c0_31 = arith.constant 0 : index
    %c0_32 = arith.constant 0 : index
    %126 = vector.load %arg4[%c0_31, %c0_32] : memref<32x128xbf16, #tpu.memory_space<vmem>>, vector<32x128xbf16>
    %cst_33 = arith.constant dense<0.000000e+00> : vector<16x128xf32>
    %127 = tpu.matmul %125, %126, %cst_33 {dimension_numbers = #tpu.dot_dimension_numbers<[1], [0], [0], [1], [0, 0, 1, 1], [], []>} : vector<16x32xbf16>, vector<32x128xbf16>, vector<16x128xf32> -> vector<16x128xf32>
    %128 = vector.broadcast %8 : vector<1x128xf32> to vector<16x128xf32>
    %129 = arith.addf %127, %128 : vector<16x128xf32>
    %cst_34 = arith.constant 5.000000e-01 : f32
    %130 = vector.broadcast %cst_34 : f32 to vector<16x128xf32>
    %131 = arith.mulf %130, %129 : vector<16x128xf32>
    %cst_35 = arith.constant 4.471500e-02 : f32
    %132 = vector.broadcast %cst_35 : f32 to vector<16x128xf32>
    %133 = arith.mulf %132, %129 : vector<16x128xf32>
    %134 = arith.mulf %133, %129 : vector<16x128xf32>
    %135 = arith.mulf %134, %129 : vector<16x128xf32>
    %136 = arith.addf %129, %135 : vector<16x128xf32>
    %cst_36 = arith.constant 0.797884583 : f32
    %137 = vector.broadcast %cst_36 : f32 to vector<16x128xf32>
    %138 = arith.mulf %137, %136 : vector<16x128xf32>
    %139 = math.tanh %138 : vector<16x128xf32>
    %cst_37 = arith.constant 1.000000e+00 : f32
    %140 = vector.broadcast %cst_37 : f32 to vector<16x128xf32>
    %141 = arith.addf %140, %139 : vector<16x128xf32>
    %142 = arith.mulf %131, %141 : vector<16x128xf32>
    %143 = arith.truncf %142 : vector<16x128xf32> to vector<16x128xbf16>
    %c0_38 = arith.constant 0 : index
    %c0_39 = arith.constant 0 : index
    %144 = vector.load %arg5[%c0_38, %c0_39] : memref<128x32xbf16, #tpu.memory_space<vmem>>, vector<128x32xbf16>
    %cst_40 = arith.constant dense<0.000000e+00> : vector<16x32xf32>
    %145 = tpu.matmul %143, %144, %cst_40 {dimension_numbers = #tpu.dot_dimension_numbers<[1], [0], [0], [1], [0, 0, 1, 1], [], []>} : vector<16x128xbf16>, vector<128x32xbf16>, vector<16x32xf32> -> vector<16x32xf32>
    %146 = vector.broadcast %6 : vector<1x32xf32> to vector<16x32xf32>
    %147 = arith.addf %145, %146 : vector<16x32xf32>
    %148 = arith.addf %102, %147 : vector<16x32xf32>
    %c0_41 = arith.constant 0 : index
    %c0_42 = arith.constant 0 : index
    %149 = vector.load %arg6[%c0_41, %c0_42] : memref<16x32xf32, #tpu.memory_space<vmem>>, vector<16x32xf32>
    tpu.vector_store %arg6[%c0_41, %c0_42], %148 {strides = array<i32>} : memref<16x32xf32, #tpu.memory_space<vmem>>, vector<16x32xf32>,
    return
  }
}

</mosaic_0001>

<llo_original>
// kernel: tpu_custom_call.1
$region0: #{tpu_custom_call.1}
  #allocation0 [shape = 'u32[]', space=smem, size = 0x4, offset = 0x4, fixed_abs, tag = 'smem constant byte address 0x4 - core index']
  #allocation1 [shape = 'u32[144,128]{1,0:T(1,128)}', space=vmem, size = 0x12000, scoped, tag = 'internal scratch']
  %s0 = inlined_call_operand.vmem [shape: f32[16,32], index: 0, kind: input, shape index: {}]
  %s1 = inlined_call_operand.vmem [shape: f32[24,128], index: 1, kind: input, shape index: {}]
  %s2 = inlined_call_operand.vmem [shape: bf16[32,96], index: 2, kind: input, shape index: {}]
  %s3 = inlined_call_operand.vmem [shape: bf16[32,32], index: 3, kind: input, shape index: {}]
  %s4 = inlined_call_operand.hbm [shape: bf16[32,128], index: 4, kind: input, shape index: {}]
  %s5 = inlined_call_operand.vmem [shape: bf16[128,32], index: 5, kind: input, shape index: {}]
  %s6 = inlined_call_operand.hbm [shape: f32[16,32], index: 6, kind: output, shape index: {}]
  %s7 = sld [smem:[#allocation0]]
  $region38: #{tpu_custom_call.1} parent=0
    _
  %s9 = ssub.s32 1, %s7
  %s10 = scalar_select 0, %s9, %s7
  $region1: #{tpu_custom_call.1} parent=0
    #allocation2 [shape = 'u8[8192]{0}', space=vmem, size = 0x2000, scoped, tag = 'input window, operand 4, single buffered']
    #allocation3 [shape = 's32[1]{0}', space=sflag, size = 0x4, scoped, tag = 'scoped memory for tpu_custom_call.1']
    #allocation4 [shape = 's32[1]{0}', space=sflag, size = 0x4, scoped, tag = 'scoped memory for tpu_custom_call.1']
    #allocation5 [shape = 'u8[8192]{0}', space=vmem, size = 0x2000, scoped, tag = 'output window, operand 0, single buffered']
    %11 = vsyncpa [#allocation3], 0
    %12 = vsyncpa [#allocation4], 0
    // Predicated region
    $region2: #{tpu_custom_call.1} parent=1 // pred_check
      _
    $region3: #{tpu_custom_call.1} parent=1 // pred_check_branch
      %14 = sbr.rel (0) target = $region5
    $region4: #{tpu_custom_call.1} parent=1 // pred_region
      _
    $region5: #{tpu_custom_call.1} parent=1 // pred_fallthru
      _
    // Predicated region
    $region6: #{tpu_custom_call.1} parent=1 // pred_check
      _
    $region7: #{tpu_custom_call.1} parent=1 // pred_check_branch
      %16 = sbr.rel (0) target = $region9
    $region8: #{tpu_custom_call.1} parent=1 // pred_region
      _
    $region9: #{tpu_custom_call.1} parent=1 // pred_fallthru
      _
    // Predicated region
    $region10: #{tpu_custom_call.1} parent=1 // pred_check
      _
    $region11: #{tpu_custom_call.1} parent=1 // pred_check_branch
      %18 = sbr.rel (0) target = $region13
    $region12: #{tpu_custom_call.1} parent=1 // pred_region
      _
    $region13: #{tpu_custom_call.1} parent=1 // pred_fallthru
      _
    // Predicated region
    $region14: #{tpu_custom_call.1} parent=1 // pred_check
      _
    $region15: #{tpu_custom_call.1} parent=1 // pred_check_branch
      %20 = sbr.rel (0) target = $region17
    $region16: #{tpu_custom_call.1} parent=1 // pred_region
      _
    $region17: #{tpu_custom_call.1} parent=1 // pred_fallthru
      _
    // Predicated region
    $region18: #{tpu_custom_call.1} parent=1 // pred_check
      _
    $region19: #{tpu_custom_call.1} parent=1 // pred_check_branch
      %22 = sbr.rel (0) target = $region21
    $region20: #{tpu_custom_call.1} parent=1 // pred_region
      %s24 = ssub.s32 256, 256
      %25 = vsyncadd [#allocation3], %s24
      %s26 = sshll.u32 [#allocation2], 4
      %s27 = int_to_ptr.vmem [resolvable:$true] %s26
      %32 = dma.hbm_to_vmem [thread:$0]  %s4, 256, %s27, [#allocation3], 64, 64, 4
    $region21: #{tpu_custom_call.1} parent=1 // pred_fallthru
      _
    // Predicated region
    $region22: #{tpu_custom_call.1} parent=1 // pred_check
      _
    $region23: #{tpu_custom_call.1} parent=1 // pred_check_branch
      %34 = sbr.rel (0) target = $region25
    $region24: #{tpu_custom_call.1} parent=1 // pred_region
      _
    $region25: #{tpu_custom_call.1} parent=1 // pred_fallthru
      _
    // Predicated region
    $region26: #{tpu_custom_call.1} parent=1 // pred_check
      _
    $region27: #{tpu_custom_call.1} parent=1 // pred_check_branch
      %36 = sbr.rel (0) target = $region29
    $region28: #{tpu_custom_call.1} parent=1 // pred_region
      %37 = dma.done [#allocation3], 256
    $region29: #{tpu_custom_call.1} parent=1 // pred_fallthru
      _
    %v39 = vld [vmem:[%s0] sm:$0xff]
    %v40 = vld [vmem:[%s0 + $0x8] sm:$0xff]
    %v41 = vld [vmem:[%s1] sm:$0x1]
    %v42 = vld [vmem:[%s1 + $0x1] sm:$0x1]
    %v43 = vld [vmem:[%s1 + $0x2] sm:$0x1]
    %v44 = vld [vmem:[%s1 + $0x3] sm:$0x1]
    %v45 = vld [vmem:[%s1 + $0x4] sm:$0x1]
    %v46 = vld [vmem:[%s1 + $0x5] sm:$0x1]
    %v47 = vld [vmem:[%s1 + $0x6] sm:$0x1]
    %v48 = vld [vmem:[%s1 + $0x7] sm:$0x1]
    %v49 = vld [vmem:[%s1 + $0x8] sm:$0xff]
    %v50 = vld [vmem:[%s1 + $0x10] sm:$0xff]
    %vm51 = vcmask 261120
    %v52 = vsel %vm51, %v39, 0.0
    %53 = vadd.xlane.f32.xlu0 %v52
    %v54 = vpop.xlane.xlu0 %53
    %v55 = vsel %vm51, %v40, 0.0
    %56 = vadd.xlane.f32.xlu0 %v55
    %v57 = vpop.xlane.xlu0 %56
    %v58 = vrcp.pop 32.0
    %v59 = vmul.f32 %v54, %v58
    %v60 = vmul.f32 %v57, %v58
    %v61 = vsub.f32 %v39, %v59
    %v62 = vsub.f32 %v40, %v60
    %v63 = vmul.f32 %v61, %v61
    %v64 = vmul.f32 %v62, %v62
    %v65 = vsel %vm51, %v63, 0.0
    %66 = vadd.xlane.f32.xlu0 %v65
    %v67 = vpop.xlane.xlu0 %66
    %v68 = vsel %vm51, %v64, 0.0
    %69 = vadd.xlane.f32.xlu0 %v68
    %v70 = vpop.xlane.xlu0 %69
    %v71 = vmul.f32 %v67, %v58
    %v72 = vmul.f32 %v70, %v58
    %v73 = vadd.f32 %v71, 1e-05
    %v74 = vadd.f32 %v72, 1e-05
    %v75 = vrsqrt.pop %v73
    %v76 = vrsqrt.pop %v74
    %v77 = vmul.f32 %v61, %v75
    %v78 = vmul.f32 %v62, %v76
    %v79 = vlaneseq
    %v80 = vshrl.u32 %v79, 7
    %v81 = vsub.s32 0, %v80
    %v82 = vrot.slane %v41, %v81
    %v83 = vmul.f32 %v77, %v82
    %v84 = vmul.f32 %v78, %v82
    %v85 = vlaneseq
    %v86 = vshrl.u32 %v85, 7
    %v87 = vsub.s32 0, %v86
    %v88 = vrot.slane %v42, %v87
    %v89 = vadd.f32 %v83, %v88
    %v90 = vadd.f32 %v84, %v88
    %v91 = vpack.c.bf16 %v90, %v89
    %v92 = vld [vmem:[%s2] sm:$0xf]
    %v93 = vld [vmem:[%s2 + $0x4] sm:$0xf]
    %v94 = vld [vmem:[%s2 + $0x8] sm:$0xf]
    %v95 = vld [vmem:[%s2 + $0xc] sm:$0xf]
    %v96 = vlaneseq
    %v97 = vshrl.u32 %v96, 7
    %v98 = vsub.s32 0, %v97
    %v99 = vrot.slane %v47, %v98
    %v104 = vunpack.c.l.b16 %v92
    %v105 = vunpack.c.l.b16 %v93
    %v106 = vunpack.c.l.b16 %v94
    %v107 = vunpack.c.l.b16 %v95
    %v108 = vpack.c.b16 %v105, %v104
    %v109 = vpack.c.b16 %v107, %v106
    %v113 = vsel %vm51, %v91, 0
    %115 = vmatprep.subr.bf16.mxu0 0
    %116 = vmatpush1.bf16.msra.mxu0 0
    %117 = vmatprep.subr.bf16.mxu0 0
    %118 = vmatpush1.bf16.msra.mxu0 0
    %119 = vmatprep.subr.bf16.mxu0 0
    %120 = vmatpush1.bf16.msra.mxu0 0
    %121 = vmatprep.subr.bf16.mxu0 0
    %122 = vmatpush1.bf16.msra.mxu0 0
    %123 = vmatprep.subr.bf16.mxu0 0
    %124 = vmatpush1.bf16.msra.mxu0 0
    %125 = vmatprep.subr.bf16.mxu0 0
    %126 = vmatpush1.bf16.msra.mxu0 0
    %127 = vmatprep.subr.bf16.mxu0 0
    %128 = vmatpush1.bf16.msra.mxu0 %v109
    %129 = vmatprep.subr.bf16.mxu0 0
    %130 = vmatpush1.bf16.msra.mxu0 %v108
    %131 = vmatprep.subr.bf16.mxu0 0
    %132 = vmatpush2.bf16.msra.mxu0 0
    %133 = vmatprep.subr.bf16.mxu0 0
    %134 = vmatpush2.bf16.msra.mxu0 0
    %135 = vmatprep.subr.bf16.mxu0 0
    %136 = vmatpush2.bf16.msra.mxu0 0
    %137 = vmatprep.subr.bf16.mxu0 0
    %138 = vmatpush2.bf16.msra.mxu0 0
    %139 = vmatprep.subr.bf16.mxu0 0
    %140 = vmatpush2.bf16.msra.mxu0 0
    %141 = vmatprep.subr.bf16.mxu0 0
    %142 = vmatpush2.bf16.msra.mxu0 0
    %143 = vmatprep.subr.bf16.mxu0 0
    %144 = vmatpush2.bf16.msra.mxu0 0
    %145 = vmatprep.subr.bf16.mxu0 0
    %146 = vmatpush2.bf16.msra.mxu0 0
    %147 = vmatprep.mubr.bf16.mxu0 0
    %148 = vmatmul.mubr.bf16.gmra.mxu0 %v113
    %v149 = vpop.f32.mrf.mxu0
    %v150 = vadd.f32 %v99, %v149
    %v151 = vpop.f32.mrf.mxu0
    %v152 = vpop.f32.mrf.mxu0
    %v153 = vadd.f32 %v99, %v152
    %v154 = vpop.f32.mrf.mxu0
    %155 = vdwg.mxu0
    %v156 = vmul.f32 %v150, 0.35355338
    %v157 = vmul.f32 %v153, 0.35355338
    %160 = vrot.lane.b32.xlu0 %v156, 120
    %v161 = vpop.permute.xlu0 %160
    %162 = vrot.lane.b32.xlu0 %v157, 120
    %v163 = vpop.permute.xlu0 %162
    %166 = vrot.lane.b32.xlu0 %v156, 112
    %v167 = vpop.permute.xlu0 %166
    %168 = vrot.lane.b32.xlu0 %v157, 112
    %v169 = vpop.permute.xlu0 %168
    %172 = vrot.lane.b32.xlu0 %v156, 104
    %v173 = vpop.permute.xlu0 %172
    %174 = vrot.lane.b32.xlu0 %v157, 104
    %v175 = vpop.permute.xlu0 %174
    %v178 = vpack.c.bf16 %v157, %v156
    %v179 = vpack.c.bf16 %v163, %v161
    %v180 = vpack.c.bf16 %v169, %v167
    %v181 = vpack.c.bf16 %v175, %v173
    %184 = vrot.lane.b32.xlu0 %v150, 120
    %v185 = vpop.permute.xlu0 %184
    %186 = vrot.lane.b32.xlu0 %v153, 120
    %v187 = vpop.permute.xlu0 %186
    %190 = vrot.lane.b32.xlu0 %v150, 112
    %v191 = vpop.permute.xlu0 %190
    %192 = vrot.lane.b32.xlu0 %v153, 112
    %v193 = vpop.permute.xlu0 %192
    %196 = vrot.lane.b32.xlu0 %v150, 104
    %v197 = vpop.permute.xlu0 %196
    %198 = vrot.lane.b32.xlu0 %v153, 104
    %v199 = vpop.permute.xlu0 %198
    %v202 = vpack.c.bf16 %v153, %v150
    %v203 = vpack.c.bf16 %v187, %v185
    %v204 = vpack.c.bf16 %v193, %v191
    %v205 = vpack.c.bf16 %v199, %v197
    %207 = vrot.lane.b32.xlu0 %v202, 96
    %v208 = vpop.permute.xlu0 %207
    %vm209 = vcmask 64512
    %v211 = vsel %vm209, %v178, 0
    %v214 = vsel %vm209, %v208, 0
    %216 = vmatprep.subr.bf16.mxu0 0
    %217 = vmatpush1.bf16.xpose.msra.mxu0 0
    %218 = vmatprep.subr.bf16.mxu0 0
    %219 = vmatpush1.bf16.xpose.msra.mxu0 0
    %220 = vmatprep.subr.bf16.mxu0 0
    %221 = vmatpush1.bf16.xpose.msra.mxu0 0
    %222 = vmatprep.subr.bf16.mxu0 0
    %223 = vmatpush1.bf16.xpose.msra.mxu0 0
    %224 = vmatprep.subr.bf16.mxu0 0
    %225 = vmatpush1.bf16.xpose.msra.mxu0 0
    %226 = vmatprep.subr.bf16.mxu0 0
    %227 = vmatpush1.bf16.xpose.msra.mxu0 0
    %228 = vmatprep.subr.bf16.mxu0 0
    %229 = vmatpush1.bf16.xpose.msra.mxu0 0
    %230 = vmatprep.subr.bf16.mxu0 0
    %231 = vmatpush1.bf16.xpose.msra.mxu0 %v214
    %232 = vmatprep.subr.bf16.mxu0 0
    %233 = vmatpush2.bf16.xpose.msra.mxu0 0
    %234 = vmatprep.subr.bf16.mxu0 0
    %235 = vmatpush2.bf16.xpose.msra.mxu0 0
    %236 = vmatprep.subr.bf16.mxu0 0
    %237 = vmatpush2.bf16.xpose.msra.mxu0 0
    %238 = vmatprep.subr.bf16.mxu0 0
    %239 = vmatpush2.bf16.xpose.msra.mxu0 0
    %240 = vmatprep.subr.bf16.mxu0 0
    %241 = vmatpush2.bf16.xpose.msra.mxu0 0
    %242 = vmatprep.subr.bf16.mxu0 0
    %243 = vmatpush2.bf16.xpose.msra.mxu0 0
    %244 = vmatprep.subr.bf16.mxu0 0
    %245 = vmatpush2.bf16.xpose.msra.mxu0 0
    %246 = vmatprep.subr.bf16.mxu0 0
    %247 = vmatpush2.bf16.xpose.msra.mxu0 0
    %248 = vmatprep.mubr.bf16.mxu0 0
    %249 = vmatmul.mubr.bf16.gmra.mxu0 %v211
    %v250 = vpop.f32.mrf.mxu0
    %v251 = vadd.f32 %v49, %v250
    %v252 = vpop.f32.mrf.mxu0
    %v253 = vpop.f32.mrf.mxu0
    %v254 = vadd.f32 %v50, %v253
    %v255 = vpop.f32.mrf.mxu0
    %256 = vdwg.mxu0
    %258 = vrot.lane.b32.xlu0 %v203, 96
    %v259 = vpop.permute.xlu0 %258
    %v261 = vsel %vm209, %v179, 0
    %v264 = vsel %vm209, %v259, 0
    %266 = vmatprep.subr.bf16.mxu0 0
    %267 = vmatpush1.bf16.xpose.msra.mxu0 0
    %268 = vmatprep.subr.bf16.mxu0 0
    %269 = vmatpush1.bf16.xpose.msra.mxu0 0
    %270 = vmatprep.subr.bf16.mxu0 0
    %271 = vmatpush1.bf16.xpose.msra.mxu0 0
    %272 = vmatprep.subr.bf16.mxu0 0
    %273 = vmatpush1.bf16.xpose.msra.mxu0 0
    %274 = vmatprep.subr.bf16.mxu0 0
    %275 = vmatpush1.bf16.xpose.msra.mxu0 0
    %276 = vmatprep.subr.bf16.mxu0 0
    %277 = vmatpush1.bf16.xpose.msra.mxu0 0
    %278 = vmatprep.subr.bf16.mxu0 0
    %279 = vmatpush1.bf16.xpose.msra.mxu0 0
    %280 = vmatprep.subr.bf16.mxu0 0
    %281 = vmatpush1.bf16.xpose.msra.mxu0 %v264
    %282 = vmatprep.subr.bf16.mxu0 0
    %283 = vmatpush2.bf16.xpose.msra.mxu0 0
    %284 = vmatprep.subr.bf16.mxu0 0
    %285 = vmatpush2.bf16.xpose.msra.mxu0 0
    %286 = vmatprep.subr.bf16.mxu0 0
    %287 = vmatpush2.bf16.xpose.msra.mxu0 0
    %288 = vmatprep.subr.bf16.mxu0 0
    %289 = vmatpush2.bf16.xpose.msra.mxu0 0
    %290 = vmatprep.subr.bf16.mxu0 0
    %291 = vmatpush2.bf16.xpose.msra.mxu0 0
    %292 = vmatprep.subr.bf16.mxu0 0
    %293 = vmatpush2.bf16.xpose.msra.mxu0 0
    %294 = vmatprep.subr.bf16.mxu0 0
    %295 = vmatpush2.bf16.xpose.msra.mxu0 0
    %296 = vmatprep.subr.bf16.mxu0 0
    %297 = vmatpush2.bf16.xpose.msra.mxu0 0
    %298 = vmatprep.mubr.bf16.mxu0 0
    %299 = vmatmul.mubr.bf16.gmra.mxu0 %v261
    %v300 = vpop.f32.mrf.mxu0
    %v301 = vadd.f32 %v49, %v300
    %v302 = vpop.f32.mrf.mxu0
    %v303 = vpop.f32.mrf.mxu0
    %v304 = vadd.f32 %v50, %v303
    %v305 = vpop.f32.mrf.mxu0
    %306 = vdwg.mxu0
    %308 = vrot.lane.b32.xlu0 %v204, 96
    %v309 = vpop.permute.xlu0 %308
    %v311 = vsel %vm209, %v180, 0
    %v314 = vsel %vm209, %v309, 0
    %316 = vmatprep.subr.bf16.mxu0 0
    %317 = vmatpush1.bf16.xpose.msra.mxu0 0
    %318 = vmatprep.subr.bf16.mxu0 0
    %319 = vmatpush1.bf16.xpose.msra.mxu0 0
    %320 = vmatprep.subr.bf16.mxu0 0
    %321 = vmatpush1.bf16.xpose.msra.mxu0 0
    %322 = vmatprep.subr.bf16.mxu0 0
    %323 = vmatpush1.bf16.xpose.msra.mxu0 0
    %324 = vmatprep.subr.bf16.mxu0 0
    %325 = vmatpush1.bf16.xpose.msra.mxu0 0
    %326 = vmatprep.subr.bf16.mxu0 0
    %327 = vmatpush1.bf16.xpose.msra.mxu0 0
    %328 = vmatprep.subr.bf16.mxu0 0
    %329 = vmatpush1.bf16.xpose.msra.mxu0 0
    %330 = vmatprep.subr.bf16.mxu0 0
    %331 = vmatpush1.bf16.xpose.msra.mxu0 %v314
    %332 = vmatprep.subr.bf16.mxu0 0
    %333 = vmatpush2.bf16.xpose.msra.mxu0 0
    %334 = vmatprep.subr.bf16.mxu0 0
    %335 = vmatpush2.bf16.xpose.msra.mxu0 0
    %336 = vmatprep.subr.bf16.mxu0 0
    %337 = vmatpush2.bf16.xpose.msra.mxu0 0
    %338 = vmatprep.subr.bf16.mxu0 0
    %339 = vmatpush2.bf16.xpose.msra.mxu0 0
    %340 = vmatprep.subr.bf16.mxu0 0
    %341 = vmatpush2.bf16.xpose.msra.mxu0 0
    %342 = vmatprep.subr.bf16.mxu0 0
    %343 = vmatpush2.bf16.xpose.msra.mxu0 0
    %344 = vmatprep.subr.bf16.mxu0 0
    %345 = vmatpush2.bf16.xpose.msra.mxu0 0
    %346 = vmatprep.subr.bf16.mxu0 0
    %347 = vmatpush2.bf16.xpose.msra.mxu0 0
    %348 = vmatprep.mubr.bf16.mxu0 0
    %349 = vmatmul.mubr.bf16.gmra.mxu0 %v311
    %v350 = vpop.f32.mrf.mxu0
    %v351 = vadd.f32 %v49, %v350
    %v352 = vpop.f32.mrf.mxu0
    %v353 = vpop.f32.mrf.mxu0
    %v354 = vadd.f32 %v50, %v353
    %v355 = vpop.f32.mrf.mxu0
    %356 = vdwg.mxu0
    %358 = vrot.lane.b32.xlu0 %v205, 96
    %v359 = vpop.permute.xlu0 %358
    %v361 = vsel %vm209, %v181, 0
    %v364 = vsel %vm209, %v359, 0
    %366 = vmatprep.subr.bf16.mxu0 0
    %367 = vmatpush1.bf16.xpose.msra.mxu0 0
    %368 = vmatprep.subr.bf16.mxu0 0
    %369 = vmatpush1.bf16.xpose.msra.mxu0 0
    %370 = vmatprep.subr.bf16.mxu0 0
    %371 = vmatpush1.bf16.xpose.msra.mxu0 0
    %372 = vmatprep.subr.bf16.mxu0 0
    %373 = vmatpush1.bf16.xpose.msra.mxu0 0
    %374 = vmatprep.subr.bf16.mxu0 0
    %375 = vmatpush1.bf16.xpose.msra.mxu0 0
    %376 = vmatprep.subr.bf16.mxu0 0
    %377 = vmatpush1.bf16.xpose.msra.mxu0 0
    %378 = vmatprep.subr.bf16.mxu0 0
    %379 = vmatpush1.bf16.xpose.msra.mxu0 0
    %380 = vmatprep.subr.bf16.mxu0 0
    %381 = vmatpush1.bf16.xpose.msra.mxu0 %v364
    %382 = vmatprep.subr.bf16.mxu0 0
    %383 = vmatpush2.bf16.xpose.msra.mxu0 0
    %384 = vmatprep.subr.bf16.mxu0 0
    %385 = vmatpush2.bf16.xpose.msra.mxu0 0
    %386 = vmatprep.subr.bf16.mxu0 0
    %387 = vmatpush2.bf16.xpose.msra.mxu0 0
    %388 = vmatprep.subr.bf16.mxu0 0
    %389 = vmatpush2.bf16.xpose.msra.mxu0 0
    %390 = vmatprep.subr.bf16.mxu0 0
    %391 = vmatpush2.bf16.xpose.msra.mxu0 0
    %392 = vmatprep.subr.bf16.mxu0 0
    %393 = vmatpush2.bf16.xpose.msra.mxu0 0
    %394 = vmatprep.subr.bf16.mxu0 0
    %395 = vmatpush2.bf16.xpose.msra.mxu0 0
    %396 = vmatprep.subr.bf16.mxu0 0
    %397 = vmatpush2.bf16.xpose.msra.mxu0 0
    %398 = vmatprep.mubr.bf16.mxu0 0
    %399 = vmatmul.mubr.bf16.gmra.mxu0 %v361
    %v400 = vpop.f32.mrf.mxu0
    %v401 = vadd.f32 %v49, %v400
    %v402 = vpop.f32.mrf.mxu0
    %v403 = vpop.f32.mrf.mxu0
    %v404 = vadd.f32 %v50, %v403
    %v405 = vpop.f32.mrf.mxu0
    %406 = vdwg.mxu0
    %vm407 = vcmask 130048
    %v408 = vsel %vm407, %v251, -inf
    %409 = vmax.xlane.f32.xlu0 %v408
    %v410 = vpop.xlane.xlu0 %409
    %v411 = vsel %vm407, %v254, -inf
    %412 = vmax.xlane.f32.xlu0 %v411
    %v413 = vpop.xlane.xlu0 %412
    %v414 = vsel %vm407, %v301, -inf
    %415 = vmax.xlane.f32.xlu0 %v414
    %v416 = vpop.xlane.xlu0 %415
    %v417 = vsel %vm407, %v304, -inf
    %418 = vmax.xlane.f32.xlu0 %v417
    %v419 = vpop.xlane.xlu0 %418
    %v420 = vsel %vm407, %v351, -inf
    %421 = vmax.xlane.f32.xlu0 %v420
    %v422 = vpop.xlane.xlu0 %421
    %v423 = vsel %vm407, %v354, -inf
    %424 = vmax.xlane.f32.xlu0 %v423
    %v425 = vpop.xlane.xlu0 %424
    %v426 = vsel %vm407, %v401, -inf
    %427 = vmax.xlane.f32.xlu0 %v426
    %v428 = vpop.xlane.xlu0 %427
    %v429 = vsel %vm407, %v404, -inf
    %430 = vmax.xlane.f32.xlu0 %v429
    %v431 = vpop.xlane.xlu0 %430
    %v432 = vsub.f32 %v251, %v410
    %v433 = vsub.f32 %v254, %v413
    %v434 = vsub.f32 %v301, %v416
    %v435 = vsub.f32 %v304, %v419
    %v436 = vsub.f32 %v351, %v422
    %v437 = vsub.f32 %v354, %v425
    %v438 = vsub.f32 %v401, %v428
    %v439 = vsub.f32 %v404, %v431
    %v440 = vmul.f32 %v432, 1.442695
    %v441 = vpow.pop %v440
    %v442 = vmul.f32 %v433, 1.442695
    %v443 = vpow.pop %v442
    %v444 = vmul.f32 %v434, 1.442695
    %v445 = vpow.pop %v444
    %v446 = vmul.f32 %v435, 1.442695
    %v447 = vpow.pop %v446
    %v448 = vmul.f32 %v436, 1.442695
    %v449 = vpow.pop %v448
    %v450 = vmul.f32 %v437, 1.442695
    %v451 = vpow.pop %v450
    %v452 = vmul.f32 %v438, 1.442695
    %v453 = vpow.pop %v452
    %v454 = vmul.f32 %v439, 1.442695
    %v455 = vpow.pop %v454
    %v456 = vsel %vm407, %v441, 0.0
    %457 = vadd.xlane.f32.xlu0 %v456
    %v458 = vpop.xlane.xlu0 %457
    %v459 = vsel %vm407, %v443, 0.0
    %460 = vadd.xlane.f32.xlu0 %v459
    %v461 = vpop.xlane.xlu0 %460
    %v462 = vsel %vm407, %v445, 0.0
    %463 = vadd.xlane.f32.xlu0 %v462
    %v464 = vpop.xlane.xlu0 %463
    %v465 = vsel %vm407, %v447, 0.0
    %466 = vadd.xlane.f32.xlu0 %v465
    %v467 = vpop.xlane.xlu0 %466
    %v468 = vsel %vm407, %v449, 0.0
    %469 = vadd.xlane.f32.xlu0 %v468
    %v470 = vpop.xlane.xlu0 %469
    %v471 = vsel %vm407, %v451, 0.0
    %472 = vadd.xlane.f32.xlu0 %v471
    %v473 = vpop.xlane.xlu0 %472
    %v474 = vsel %vm407, %v453, 0.0
    %475 = vadd.xlane.f32.xlu0 %v474
    %v476 = vpop.xlane.xlu0 %475
    %v477 = vsel %vm407, %v455, 0.0
    %478 = vadd.xlane.f32.xlu0 %v477
    %v479 = vpop.xlane.xlu0 %478
    %v480 = vrcp.pop %v458
    %v481 = vrcp.pop %v461
    %v482 = vrcp.pop %v464
    %v483 = vrcp.pop %v467
    %v484 = vrcp.pop %v470
    %v485 = vrcp.pop %v473
    %v486 = vrcp.pop %v476
    %v487 = vrcp.pop %v479
    %v488 = vmul.f32 %v441, %v480
    %v489 = vmul.f32 %v443, %v481
    %v490 = vmul.f32 %v445, %v482
    %v491 = vmul.f32 %v447, %v483
    %v492 = vmul.f32 %v449, %v484
    %v493 = vmul.f32 %v451, %v485
    %v494 = vmul.f32 %v453, %v486
    %v495 = vmul.f32 %v455, %v487
    %v496 = vpack.c.bf16 %v489, %v488
    %v497 = vpack.c.bf16 %v491, %v490
    %v498 = vpack.c.bf16 %v493, %v492
    %v499 = vpack.c.bf16 %v495, %v494
    %500 = vrot.lane.b32.xlu0 %v202, 64
    %v501 = vpop.permute.xlu0 %500
    %v504 = vsel %vm407, %v496, 0
    %506 = vmatprep.subr.bf16.mxu0 0
    %507 = vmatpush1.bf16.msra.mxu0 0
    %508 = vmatprep.subr.bf16.mxu0 0
    %509 = vmatpush1.bf16.msra.mxu0 0
    %510 = vmatprep.subr.bf16.mxu0 0
    %511 = vmatpush1.bf16.msra.mxu0 0
    %512 = vmatprep.subr.bf16.mxu0 0
    %513 = vmatpush1.bf16.msra.mxu0 0
    %514 = vmatprep.subr.bf16.mxu0 0
    %515 = vmatpush1.bf16.msra.mxu0 0
    %516 = vmatprep.subr.bf16.mxu0 0
    %517 = vmatpush1.bf16.msra.mxu0 0
    %518 = vmatprep.subr.bf16.mxu0 0
    %519 = vmatpush1.bf16.msra.mxu0 0
    %520 = vmatprep.subr.bf16.mxu0 0
    %521 = vmatpush1.bf16.msra.mxu0 %v501
    %522 = vmatprep.subr.bf16.mxu0 0
    %523 = vmatpush2.bf16.msra.mxu0 0
    %524 = vmatprep.subr.bf16.mxu0 0
    %525 = vmatpush2.bf16.msra.mxu0 0
    %526 = vmatprep.subr.bf16.mxu0 0
    %527 = vmatpush2.bf16.msra.mxu0 0
    %528 = vmatprep.subr.bf16.mxu0 0
    %529 = vmatpush2.bf16.msra.mxu0 0
    %530 = vmatprep.subr.bf16.mxu0 0
    %531 = vmatpush2.bf16.msra.mxu0 0
    %532 = vmatprep.subr.bf16.mxu0 0
    %533 = vmatpush2.bf16.msra.mxu0 0
    %534 = vmatprep.subr.bf16.mxu0 0
    %535 = vmatpush2.bf16.msra.mxu0 0
    %536 = vmatprep.subr.bf16.mxu0 0
    %537 = vmatpush2.bf16.msra.mxu0 0
    %538 = vmatprep.mubr.bf16.mxu0 0
    %539 = vmatmul.mubr.bf16.gmra.mxu0 %v504
    %v540 = vpop.f32.mrf.mxu0
    %v541 = vadd.f32 0.0, %v540
    %v542 = vpop.f32.mrf.mxu0
    %v543 = vpop.f32.mrf.mxu0
    %v544 = vadd.f32 0.0, %v543
    %v545 = vpop.f32.mrf.mxu0
    %546 = vdwg.mxu0
    %547 = vrot.lane.b32.xlu0 %v203, 64
    %v548 = vpop.permute.xlu0 %547
    %v551 = vsel %vm407, %v497, 0
    %553 = vmatprep.subr.bf16.mxu0 0
    %554 = vmatpush1.bf16.msra.mxu0 0
    %555 = vmatprep.subr.bf16.mxu0 0
    %556 = vmatpush1.bf16.msra.mxu0 0
    %557 = vmatprep.subr.bf16.mxu0 0
    %558 = vmatpush1.bf16.msra.mxu0 0
    %559 = vmatprep.subr.bf16.mxu0 0
    %560 = vmatpush1.bf16.msra.mxu0 0
    %561 = vmatprep.subr.bf16.mxu0 0
    %562 = vmatpush1.bf16.msra.mxu0 0
    %563 = vmatprep.subr.bf16.mxu0 0
    %564 = vmatpush1.bf16.msra.mxu0 0
    %565 = vmatprep.subr.bf16.mxu0 0
    %566 = vmatpush1.bf16.msra.mxu0 0
    %567 = vmatprep.subr.bf16.mxu0 0
    %568 = vmatpush1.bf16.msra.mxu0 %v548
    %569 = vmatprep.subr.bf16.mxu0 0
    %570 = vmatpush2.bf16.msra.mxu0 0
    %571 = vmatprep.subr.bf16.mxu0 0
    %572 = vmatpush2.bf16.msra.mxu0 0
    %573 = vmatprep.subr.bf16.mxu0 0
    %574 = vmatpush2.bf16.msra.mxu0 0
    %575 = vmatprep.subr.bf16.mxu0 0
    %576 = vmatpush2.bf16.msra.mxu0 0
    %577 = vmatprep.subr.bf16.mxu0 0
    %578 = vmatpush2.bf16.msra.mxu0 0
    %579 = vmatprep.subr.bf16.mxu0 0
    %580 = vmatpush2.bf16.msra.mxu0 0
    %581 = vmatprep.subr.bf16.mxu0 0
    %582 = vmatpush2.bf16.msra.mxu0 0
    %583 = vmatprep.subr.bf16.mxu0 0
    %584 = vmatpush2.bf16.msra.mxu0 0
    %585 = vmatprep.mubr.bf16.mxu0 0
    %586 = vmatmul.mubr.bf16.gmra.mxu0 %v551
    %v587 = vpop.f32.mrf.mxu0
    %v588 = vadd.f32 0.0, %v587
    %v589 = vpop.f32.mrf.mxu0
    %v590 = vpop.f32.mrf.mxu0
    %v591 = vadd.f32 0.0, %v590
    %v592 = vpop.f32.mrf.mxu0
    %593 = vdwg.mxu0
    %594 = vrot.lane.b32.xlu0 %v204, 64
    %v595 = vpop.permute.xlu0 %594
    %v598 = vsel %vm407, %v498, 0
    %600 = vmatprep.subr.bf16.mxu0 0
    %601 = vmatpush1.bf16.msra.mxu0 0
    %602 = vmatprep.subr.bf16.mxu0 0
    %603 = vmatpush1.bf16.msra.mxu0 0
    %604 = vmatprep.subr.bf16.mxu0 0
    %605 = vmatpush1.bf16.msra.mxu0 0
    %606 = vmatprep.subr.bf16.mxu0 0
    %607 = vmatpush1.bf16.msra.mxu0 0
    %608 = vmatprep.subr.bf16.mxu0 0
    %609 = vmatpush1.bf16.msra.mxu0 0
    %610 = vmatprep.subr.bf16.mxu0 0
    %611 = vmatpush1.bf16.msra.mxu0 0
    %612 = vmatprep.subr.bf16.mxu0 0
    %613 = vmatpush1.bf16.msra.mxu0 0
    %614 = vmatprep.subr.bf16.mxu0 0
    %615 = vmatpush1.bf16.msra.mxu0 %v595
    %616 = vmatprep.subr.bf16.mxu0 0
    %617 = vmatpush2.bf16.msra.mxu0 0
    %618 = vmatprep.subr.bf16.mxu0 0
    %619 = vmatpush2.bf16.msra.mxu0 0
    %620 = vmatprep.subr.bf16.mxu0 0
    %621 = vmatpush2.bf16.msra.mxu0 0
    %622 = vmatprep.subr.bf16.mxu0 0
    %623 = vmatpush2.bf16.msra.mxu0 0
    %624 = vmatprep.subr.bf16.mxu0 0
    %625 = vmatpush2.bf16.msra.mxu0 0
    %626 = vmatprep.subr.bf16.mxu0 0
    %627 = vmatpush2.bf16.msra.mxu0 0
    %628 = vmatprep.subr.bf16.mxu0 0
    %629 = vmatpush2.bf16.msra.mxu0 0
    %630 = vmatprep.subr.bf16.mxu0 0
    %631 = vmatpush2.bf16.msra.mxu0 0
    %632 = vmatprep.mubr.bf16.mxu0 0
    %633 = vmatmul.mubr.bf16.gmra.mxu0 %v598
    %v634 = vpop.f32.mrf.mxu0
    %v635 = vadd.f32 0.0, %v634
    %v636 = vpop.f32.mrf.mxu0
    %v637 = vpop.f32.mrf.mxu0
    %v638 = vadd.f32 0.0, %v637
    %v639 = vpop.f32.mrf.mxu0
    %640 = vdwg.mxu0
    %641 = vrot.lane.b32.xlu0 %v205, 64
    %v642 = vpop.permute.xlu0 %641
    %v645 = vsel %vm407, %v499, 0
    %647 = vmatprep.subr.bf16.mxu0 0
    %648 = vmatpush1.bf16.msra.mxu0 0
    %649 = vmatprep.subr.bf16.mxu0 0
    %650 = vmatpush1.bf16.msra.mxu0 0
    %651 = vmatprep.subr.bf16.mxu0 0
    %652 = vmatpush1.bf16.msra.mxu0 0
    %653 = vmatprep.subr.bf16.mxu0 0
    %654 = vmatpush1.bf16.msra.mxu0 0
    %655 = vmatprep.subr.bf16.mxu0 0
    %656 = vmatpush1.bf16.msra.mxu0 0
    %657 = vmatprep.subr.bf16.mxu0 0
    %658 = vmatpush1.bf16.msra.mxu0 0
    %659 = vmatprep.subr.bf16.mxu0 0
    %660 = vmatpush1.bf16.msra.mxu0 0
    %661 = vmatprep.subr.bf16.mxu0 0
    %662 = vmatpush1.bf16.msra.mxu0 %v642
    %663 = vmatprep.subr.bf16.mxu0 0
    %664 = vmatpush2.bf16.msra.mxu0 0
    %665 = vmatprep.subr.bf16.mxu0 0
    %666 = vmatpush2.bf16.msra.mxu0 0
    %667 = vmatprep.subr.bf16.mxu0 0
    %668 = vmatpush2.bf16.msra.mxu0 0
    %669 = vmatprep.subr.bf16.mxu0 0
    %670 = vmatpush2.bf16.msra.mxu0 0
    %671 = vmatprep.subr.bf16.mxu0 0
    %672 = vmatpush2.bf16.msra.mxu0 0
    %673 = vmatprep.subr.bf16.mxu0 0
    %674 = vmatpush2.bf16.msra.mxu0 0
    %675 = vmatprep.subr.bf16.mxu0 0
    %676 = vmatpush2.bf16.msra.mxu0 0
    %677 = vmatprep.subr.bf16.mxu0 0
    %678 = vmatpush2.bf16.msra.mxu0 0
    %679 = vmatprep.mubr.bf16.mxu0 0
    %680 = vmatmul.mubr.bf16.gmra.mxu0 %v645
    %v681 = vpop.f32.mrf.mxu0
    %v682 = vadd.f32 0.0, %v681
    %v683 = vpop.f32.mrf.mxu0
    %v684 = vpop.f32.mrf.mxu0
    %v685 = vadd.f32 0.0, %v684
    %v686 = vpop.f32.mrf.mxu0
    %687 = vdwg.mxu0
    %690 = vrot.lane.b32.xlu0 %v588, 8
    %v691 = vpop.permute.xlu0 %690
    %692 = vrot.lane.b32.xlu0 %v591, 8
    %v693 = vpop.permute.xlu0 %692
    %698 = vrot.lane.b32.xlu0 %v635, 16
    %v699 = vpop.permute.xlu0 %698
    %700 = vrot.lane.b32.xlu0 %v638, 16
    %v701 = vpop.permute.xlu0 %700
    %706 = vrot.lane.b32.xlu0 %v682, 24
    %v707 = vpop.permute.xlu0 %706
    %708 = vrot.lane.b32.xlu0 %v685, 24
    %v709 = vpop.permute.xlu0 %708
    %v712 = vsel %vm209, %v541, %v691
    %v713 = vsel %vm209, %v544, %v693
    %v714 = vsel %vm407, %v712, %v699
    %v715 = vsel %vm407, %v713, %v701
    %vm716 = vcmask 195584
    %v717 = vsel %vm716, %v714, %v707
    %v718 = vsel %vm716, %v715, %v709
    %v719 = vpack.c.bf16 %v718, %v717
    %v720 = vld [vmem:[%s3] sm:$0xf]
    %v721 = vld [vmem:[%s3 + $0x4] sm:$0xf]
    %v722 = vld [vmem:[%s3 + $0x8] sm:$0xf]
    %v723 = vld [vmem:[%s3 + $0xc] sm:$0xf]
    %v724 = vlaneseq
    %v725 = vshrl.u32 %v724, 7
    %v726 = vsub.s32 0, %v725
    %v727 = vrot.slane %v45, %v726
    %v732 = vunpack.c.l.b16 %v720
    %v733 = vunpack.c.l.b16 %v721
    %v734 = vunpack.c.l.b16 %v722
    %v735 = vunpack.c.l.b16 %v723
    %v736 = vpack.c.b16 %v733, %v732
    %v737 = vpack.c.b16 %v735, %v734
    %v741 = vsel %vm51, %v719, 0
    %743 = vmatprep.subr.bf16.mxu0 0
    %744 = vmatpush1.bf16.msra.mxu0 0
    %745 = vmatprep.subr.bf16.mxu0 0
    %746 = vmatpush1.bf16.msra.mxu0 0
    %747 = vmatprep.subr.bf16.mxu0 0
    %748 = vmatpush1.bf16.msra.mxu0 0
    %749 = vmatprep.subr.bf16.mxu0 0
    %750 = vmatpush1.bf16.msra.mxu0 0
    %751 = vmatprep.subr.bf16.mxu0 0
    %752 = vmatpush1.bf16.msra.mxu0 0
    %753 = vmatprep.subr.bf16.mxu0 0
    %754 = vmatpush1.bf16.msra.mxu0 0
    %755 = vmatprep.subr.bf16.mxu0 0
    %756 = vmatpush1.bf16.msra.mxu0 %v737
    %757 = vmatprep.subr.bf16.mxu0 0
    %758 = vmatpush1.bf16.msra.mxu0 %v736
    %759 = vmatprep.subr.bf16.mxu0 0
    %760 = vmatpush2.bf16.msra.mxu0 0
    %761 = vmatprep.subr.bf16.mxu0 0
    %762 = vmatpush2.bf16.msra.mxu0 0
    %763 = vmatprep.subr.bf16.mxu0 0
    %764 = vmatpush2.bf16.msra.mxu0 0
    %765 = vmatprep.subr.bf16.mxu0 0
    %766 = vmatpush2.bf16.msra.mxu0 0
    %767 = vmatprep.subr.bf16.mxu0 0
    %768 = vmatpush2.bf16.msra.mxu0 0
    %769 = vmatprep.subr.bf16.mxu0 0
    %770 = vmatpush2.bf16.msra.mxu0 0
    %771 = vmatprep.subr.bf16.mxu0 0
    %772 = vmatpush2.bf16.msra.mxu0 0
    %773 = vmatprep.subr.bf16.mxu0 0
    %774 = vmatpush2.bf16.msra.mxu0 0
    %775 = vmatprep.mubr.bf16.mxu0 0
    %776 = vmatmul.mubr.bf16.gmra.mxu0 %v741
    %v777 = vpop.f32.mrf.mxu0
    %v778 = vadd.f32 %v727, %v777
    %v779 = vpop.f32.mrf.mxu0
    %v780 = vpop.f32.mrf.mxu0
    %v781 = vadd.f32 %v727, %v780
    %v782 = vpop.f32.mrf.mxu0
    %783 = vdwg.mxu0
    %v784 = vadd.f32 %v39, %v778
    %v785 = vadd.f32 %v40, %v781
    %v786 = vsel %vm51, %v784, 0.0
    %787 = vadd.xlane.f32.xlu0 %v786
    %v788 = vpop.xlane.xlu0 %787
    %v789 = vsel %vm51, %v785, 0.0
    %790 = vadd.xlane.f32.xlu0 %v789
    %v791 = vpop.xlane.xlu0 %790
    %v792 = vmul.f32 %v788, %v58
    %v793 = vmul.f32 %v791, %v58
    %v794 = vsub.f32 %v784, %v792
    %v795 = vsub.f32 %v785, %v793
    %v796 = vmul.f32 %v794, %v794
    %v797 = vmul.f32 %v795, %v795
    %v798 = vsel %vm51, %v796, 0.0
    %799 = vadd.xlane.f32.xlu0 %v798
    %v800 = vpop.xlane.xlu0 %799
    %v801 = vsel %vm51, %v797, 0.0
    %802 = vadd.xlane.f32.xlu0 %v801
    %v803 = vpop.xlane.xlu0 %802
    %v804 = vmul.f32 %v800, %v58
    %v805 = vmul.f32 %v803, %v58
    %v806 = vadd.f32 %v804, 1e-05
    %v807 = vadd.f32 %v805, 1e-05
    %v808 = vrsqrt.pop %v806
    %v809 = vrsqrt.pop %v807
    %v810 = vmul.f32 %v794, %v808
    %v811 = vmul.f32 %v795, %v809
    %v812 = vlaneseq
    %v813 = vshrl.u32 %v812, 7
    %v814 = vsub.s32 0, %v813
    %v815 = vrot.slane %v43, %v814
    %v816 = vmul.f32 %v810, %v815
    %v817 = vmul.f32 %v811, %v815
    %v818 = vlaneseq
    %v819 = vshrl.u32 %v818, 7
    %v820 = vsub.s32 0, %v819
    %v821 = vrot.slane %v44, %v820
    %v822 = vadd.f32 %v816, %v821
    %v823 = vadd.f32 %v817, %v821
    %v824 = vpack.c.bf16 %v823, %v822
    %v825 = vld [vmem:[#allocation2] sm:$0xf]
    %v826 = vld [vmem:[#allocation2 + $0x4] sm:$0xf]
    %v827 = vld [vmem:[#allocation2 + $0x8] sm:$0xf]
    %v828 = vld [vmem:[#allocation2 + $0xc] sm:$0xf]
    %v829 = vlaneseq
    %v830 = vshrl.u32 %v829, 7
    %v831 = vsub.s32 0, %v830
    %v832 = vrot.slane %v48, %v831
    %v837 = vunpack.c.l.b16 %v825
    %v838 = vunpack.c.l.b16 %v826
    %v839 = vunpack.c.l.b16 %v827
    %v840 = vunpack.c.l.b16 %v828
    %v841 = vpack.c.b16 %v838, %v837
    %v842 = vpack.c.b16 %v840, %v839
    %v846 = vsel %vm51, %v824, 0
    %848 = vmatprep.subr.bf16.mxu0 0
    %849 = vmatpush1.bf16.msra.mxu0 0
    %850 = vmatprep.subr.bf16.mxu0 0
    %851 = vmatpush1.bf16.msra.mxu0 0
    %852 = vmatprep.subr.bf16.mxu0 0
    %853 = vmatpush1.bf16.msra.mxu0 0
    %854 = vmatprep.subr.bf16.mxu0 0
    %855 = vmatpush1.bf16.msra.mxu0 0
    %856 = vmatprep.subr.bf16.mxu0 0
    %857 = vmatpush1.bf16.msra.mxu0 0
    %858 = vmatprep.subr.bf16.mxu0 0
    %859 = vmatpush1.bf16.msra.mxu0 0
    %860 = vmatprep.subr.bf16.mxu0 0
    %861 = vmatpush1.bf16.msra.mxu0 %v842
    %862 = vmatprep.subr.bf16.mxu0 0
    %863 = vmatpush1.bf16.msra.mxu0 %v841
    %864 = vmatprep.subr.bf16.mxu0 0
    %865 = vmatpush2.bf16.msra.mxu0 0
    %866 = vmatprep.subr.bf16.mxu0 0
    %867 = vmatpush2.bf16.msra.mxu0 0
    %868 = vmatprep.subr.bf16.mxu0 0
    %869 = vmatpush2.bf16.msra.mxu0 0
    %870 = vmatprep.subr.bf16.mxu0 0
    %871 = vmatpush2.bf16.msra.mxu0 0
    %872 = vmatprep.subr.bf16.mxu0 0
    %873 = vmatpush2.bf16.msra.mxu0 0
    %874 = vmatprep.subr.bf16.mxu0 0
    %875 = vmatpush2.bf16.msra.mxu0 0
    %876 = vmatprep.subr.bf16.mxu0 0
    %877 = vmatpush2.bf16.msra.mxu0 0
    %878 = vmatprep.subr.bf16.mxu0 0
    %879 = vmatpush2.bf16.msra.mxu0 0
    %880 = vmatprep.mubr.bf16.mxu0 0
    %881 = vmatmul.mubr.bf16.gmra.mxu0 %v846
    %v882 = vpop.f32.mrf.mxu0
    %v883 = vadd.f32 %v832, %v882
    %v884 = vpop.f32.mrf.mxu0
    %v885 = vpop.f32.mrf.mxu0
    %v886 = vadd.f32 %v832, %v885
    %v887 = vpop.f32.mrf.mxu0
    %888 = vdwg.mxu0
    %v889 = vmul.f32 %v883, 0.5
    %v890 = vmul.f32 %v886, 0.5
    %v891 = vmul.f32 %v883, 0.044715
    %v892 = vmul.f32 %v886, 0.044715
    %v893 = vmul.f32 %v891, %v883
    %v894 = vmul.f32 %v892, %v886
    %v895 = vmul.f32 %v893, %v883
    %v896 = vmul.f32 %v894, %v886
    %v897 = vadd.f32 %v883, %v895
    %v898 = vadd.f32 %v886, %v896
    %v899 = vmul.f32 %v897, 0.7978846
    %v900 = vmul.f32 %v898, 0.7978846
    %v901 = vtanh.pop %v899
    %v902 = vtanh.pop %v900
    %v903 = vadd.f32 %v901, 1.0
    %v904 = vadd.f32 %v902, 1.0
    %v905 = vmul.f32 %v889, %v903
    %v906 = vmul.f32 %v890, %v904
    %v907 = vpack.c.bf16 %v906, %v905
    %v908 = vld [vmem:[%s5] sm:$0xf]
    %v909 = vld [vmem:[%s5 + $0x4] sm:$0xf]
    %v910 = vld [vmem:[%s5 + $0x8] sm:$0xf]
    %v911 = vld [vmem:[%s5 + $0xc] sm:$0xf]
    %v912 = vld [vmem:[%s5 + $0x10] sm:$0xf]
    %v913 = vld [vmem:[%s5 + $0x14] sm:$0xf]
    %v914 = vld [vmem:[%s5 + $0x18] sm:$0xf]
    %v915 = vld [vmem:[%s5 + $0x1c] sm:$0xf]
    %v916 = vld [vmem:[%s5 + $0x20] sm:$0xf]
    %v917 = vld [vmem:[%s5 + $0x24] sm:$0xf]
    %v918 = vld [vmem:[%s5 + $0x28] sm:$0xf]
    %v919 = vld [vmem:[%s5 + $0x2c] sm:$0xf]
    %v920 = vld [vmem:[%s5 + $0x30] sm:$0xf]
    %v921 = vld [vmem:[%s5 + $0x34] sm:$0xf]
    %v922 = vld [vmem:[%s5 + $0x38] sm:$0xf]
    %v923 = vld [vmem:[%s5 + $0x3c] sm:$0xf]
    %v924 = vlaneseq
    %v925 = vshrl.u32 %v924, 7
    %v926 = vsub.s32 0, %v925
    %v927 = vrot.slane %v46, %v926
    %v944 = vunpack.c.l.b16 %v908
    %v945 = vunpack.c.l.b16 %v909
    %v946 = vunpack.c.l.b16 %v910
    %v947 = vunpack.c.l.b16 %v911
    %v948 = vunpack.c.l.b16 %v912
    %v949 = vunpack.c.l.b16 %v913
    %v950 = vunpack.c.l.b16 %v914
    %v951 = vunpack.c.l.b16 %v915
    %v952 = vunpack.c.l.b16 %v916
    %v953 = vunpack.c.l.b16 %v917
    %v954 = vunpack.c.l.b16 %v918
    %v955 = vunpack.c.l.b16 %v919
    %v956 = vunpack.c.l.b16 %v920
    %v957 = vunpack.c.l.b16 %v921
    %v958 = vunpack.c.l.b16 %v922
    %v959 = vunpack.c.l.b16 %v923
    %v960 = vpack.c.b16 %v945, %v944
    %v961 = vpack.c.b16 %v947, %v946
    %v962 = vpack.c.b16 %v949, %v948
    %v963 = vpack.c.b16 %v951, %v950
    %v964 = vpack.c.b16 %v953, %v952
    %v965 = vpack.c.b16 %v955, %v954
    %v966 = vpack.c.b16 %v957, %v956
    %v967 = vpack.c.b16 %v959, %v958
    %976 = vmatprep.subr.bf16.mxu0 0
    %977 = vmatpush1.bf16.msra.mxu0 %v967
    %978 = vmatprep.subr.bf16.mxu0 0
    %979 = vmatpush1.bf16.msra.mxu0 %v966
    %980 = vmatprep.subr.bf16.mxu0 0
    %981 = vmatpush1.bf16.msra.mxu0 %v965
    %982 = vmatprep.subr.bf16.mxu0 0
    %983 = vmatpush1.bf16.msra.mxu0 %v964
    %984 = vmatprep.subr.bf16.mxu0 0
    %985 = vmatpush1.bf16.msra.mxu0 %v963
    %986 = vmatprep.subr.bf16.mxu0 0
    %987 = vmatpush1.bf16.msra.mxu0 %v962
    %988 = vmatprep.subr.bf16.mxu0 0
    %989 = vmatpush1.bf16.msra.mxu0 %v961
    %990 = vmatprep.subr.bf16.mxu0 0
    %991 = vmatpush1.bf16.msra.mxu0 %v960
    %992 = vmatprep.subr.bf16.mxu0 0
    %993 = vmatpush2.bf16.msra.mxu0 0
    %994 = vmatprep.subr.bf16.mxu0 0
    %995 = vmatpush2.bf16.msra.mxu0 0
    %996 = vmatprep.subr.bf16.mxu0 0
    %997 = vmatpush2.bf16.msra.mxu0 0
    %998 = vmatprep.subr.bf16.mxu0 0
    %999 = vmatpush2.bf16.msra.mxu0 0
    %1000 = vmatprep.subr.bf16.mxu0 0
    %1001 = vmatpush2.bf16.msra.mxu0 0
    %1002 = vmatprep.subr.bf16.mxu0 0
    %1003 = vmatpush2.bf16.msra.mxu0 0
    %1004 = vmatprep.subr.bf16.mxu0 0
    %1005 = vmatpush2.bf16.msra.mxu0 0
    %1006 = vmatprep.subr.bf16.mxu0 0
    %1007 = vmatpush2.bf16.msra.mxu0 0
    %1008 = vmatprep.mubr.bf16.mxu0 0
    %1009 = vmatmul.mubr.bf16.gmra.mxu0 %v907
    %v1010 = vpop.f32.mrf.mxu0
    %v1011 = vadd.f32 %v927, %v1010
    %v1012 = vpop.f32.mrf.mxu0
    %v1013 = vpop.f32.mrf.mxu0
    %v1014 = vadd.f32 %v927, %v1013
    %v1015 = vpop.f32.mrf.mxu0
    %1016 = vdwg.mxu0
    %v1017 = vadd.f32 %v784, %v1011
    %v1018 = vadd.f32 %v785, %v1014
    %1019 = vst.msk [vmem:[#allocation5] sm:$0xff] %vm51, %v1017
    %1020 = vst.msk [vmem:[#allocation5 + $0x8] sm:$0xff] %vm51, %v1018
    // Predicated region
    $region30: #{tpu_custom_call.1} parent=1 // pred_check
      _
    $region31: #{tpu_custom_call.1} parent=1 // pred_check_branch
      %1022 = sbr.rel (0) target = $region33
    $region32: #{tpu_custom_call.1} parent=1 // pred_region
      %s1024 = ssub.s32 256, 256
      %1025 = vsyncadd [#allocation4], %s1024
      %s1026 = sshll.u32 [#allocation5], 4
      %s1027 = int_to_ptr.vmem [resolvable:$true] %s1026
      %1032 = dma.vmem_to_hbm [thread:$0]  %s1027, 256, %s6, [#allocation4], 128, 128, 8
    $region33: #{tpu_custom_call.1} parent=1 // pred_fallthru
      _
    // Predicated region
    $region34: #{tpu_custom_call.1} parent=1 // pred_check
      _
    $region35: #{tpu_custom_call.1} parent=1 // pred_check_branch
      %1034 = sbr.rel (0) target = $region37
    $region36: #{tpu_custom_call.1} parent=1 // pred_region
      %1035 = dma.done [#allocation4], 256
    $region37: #{tpu_custom_call.1} parent=1 // pred_fallthru
      _
    %1036 = vsyncpa [#allocation3], 1
    %1037 = vsyncpa [#allocation4], 1

</llo_original>
